<compile_context>
chip_gen: v5e
topology: v5e:2x2
jax: 0.10.0
libtpu: 0.0.40
codegen_flags: <defaults>
</compile_context>

<pallas_src>
import functools

import jax
import jax.numpy as jnp
from jax.experimental import pallas as pl
from jax.experimental.pallas import tpu as pltpu


def _round_up(x, m):
    return ((x + m - 1) // m) * m


def _temporal_revert_kernel(mask_ref, idx_ref, x_ref, *out_refs, m_valid, m_rev):
    """One grid step handles TN fused (batch*seq) rows.

    mask_ref : VMEM (1, D)              mask token (same dtype as x)
    idx_ref  : VMEM (TN, M_rev) int32   revert indices
    x_ref    : VMEM (TN, 1+M_valid, D)  temporal block tile (global + kept rows)
    out_refs : M_out refs, each VMEM (TN, D) -- one per output modality
    """
    idx = idx_ref[...]                       # (TN, M_rev) int32
    mask_row = mask_ref[...]                 # (1, D) -- broadcast inside where

    # Global token passes through as modality 0: one dense (TN, D) store.
    out_refs[0][...] = x_ref[:, 0, :]

    # Kept modality rows, read once each straight from the ref (no whole-tile
    # load / relayout temporaries).
    valid_rows = [x_ref[:, 1 + k, :] for k in range(m_valid)]

    # Vectorized gather: for output modality j, a VPU where-select chain over
    # the kept rows; any index >= m_valid (masked modality) or otherwise
    # out-of-range falls through to the mask token.  Garbage rows of a padded
    # last partial block also fall through safely; their stores are dropped.
    for j in range(m_rev):
        ij = idx[:, j:j + 1]                 # (TN, 1)
        row = None
        for k in range(m_valid):
            base = mask_row if row is None else row
            row = jnp.where(ij == k, valid_rows[k], base)
        if row is None:                      # m_valid == 0: everything masked
            row = jnp.broadcast_to(mask_row, out_refs[1 + j].shape)
        out_refs[1 + j][...] = row.astype(out_refs[1 + j].dtype)


def _vmem_budget_and_limit():
    """(block-picker budget, vmem_limit_bytes), tuned per TPU generation."""
    try:
        vmem_cap = pltpu.get_tpu_info().vmem_capacity_bytes
    except Exception:
        vmem_cap = 64 << 20                  # be conservative (v7x-sized)
    if vmem_cap <= (64 << 20):               # v7x: 64 MiB physical per TC
        return 20 << 20, 48 << 20
    return 24 << 20, 64 << 20                # v5e / v6e: 128 MiB physical


def _pick_block_rows(n, per_row_buffered, per_row_scratch, vmem_budget,
                     *, min_steps=8, min_block_bytes=2 << 20, block_rows=None):
    """Rows (multiple of 8) per grid step.

    Targets >= min_steps grid steps (v7x TC sharding + DMA/compute overlap)
    while keeping per-step blocks >= ~min_block_bytes (HBM roofline) and the
    total double-buffered footprint within vmem_budget.
    """
    if block_rows is not None:               # explicit tuning / testing knob
        return max(8, (int(block_rows) // 8) * 8)
    cap = max(8, vmem_budget // (2 * per_row_buffered + per_row_scratch))
    floor_rows = max(1, min_block_bytes // max(1, per_row_buffered))
    steps_rows = pl.cdiv(n, min_steps)
    tn = max(floor_rows, steps_rows)
    tn = min(tn, cap, n)
    return max(8, _round_up(tn, 8))


def temporal_revert(temporal_block, revert_idx, mask_token, temporal_cols,
                    *, block_rows=None):
    """Pallas implementation of TemporalRevert.forward.

    temporal_block: [B, S, 1 + M_valid, D]
    revert_idx    : int  [B, S, M_rev]   (values in [0, M_rev))
    mask_token    : [1, D] (or anything reshapeable to (1, D))
    temporal_cols : list of length 1 + M_rev
    block_rows    : optional cap on fused (B*S) rows per grid step
    """
    B, S, M_in, D = temporal_block.shape
    M_valid = M_in - 1
    M_rev = revert_idx.shape[-1]
    M_out = 1 + M_rev
    assert len(temporal_cols) == M_out
    N = B * S

    dtype = temporal_block.dtype
    x = temporal_block.reshape(N, M_in, D)
    idx = revert_idx.reshape(N, M_rev).astype(jnp.int32)
    mask = jnp.asarray(mask_token).reshape(1, D).astype(dtype)

    # Lane-dense stores: pad D up to a multiple of 128 if needed (slice after).
    Dp = _round_up(D, 128)
    if Dp != D:
        x = jnp.pad(x, ((0, 0), (0, 0), (0, Dp - D)))
        mask = jnp.pad(mask, ((0, 0), (0, Dp - D)))

    itemsize = jnp.dtype(dtype).itemsize
    pack = max(1, 4 // itemsize)                 # sublane packing (f32=1, bf16=2)
    m_in_pad = _round_up(M_in, 8 * pack)         # sublane padding of the x block
    # Double-buffered DMA blocks per fused row: x tile + M_out output tiles +
    # the lane-padded (->128) int32 idx tile.
    per_row_buffered = (m_in_pad + M_out) * Dp * itemsize + 128 * 4
    # In-kernel temporaries per row (kept rows + working select row).
    per_row_scratch = (M_valid + 2) * Dp * itemsize

    vmem_budget, vmem_limit = _vmem_budget_and_limit()
    TN = _pick_block_rows(N, per_row_buffered, per_row_scratch, vmem_budget,
                          block_rows=block_rows)
    grid = (pl.cdiv(N, TN),)

    kernel = functools.partial(_temporal_revert_kernel,
                               m_valid=M_valid, m_rev=M_rev)

    outs = pl.pallas_call(
        kernel,
        out_shape=tuple(jax.ShapeDtypeStruct((N, Dp), dtype)
                        for _ in range(M_out)),
        grid_spec=pltpu.PrefetchScalarGridSpec(
            num_scalar_prefetch=0,
            grid=grid,
            in_specs=[
                pl.BlockSpec((1, Dp), lambda i: (0, 0)),            # mask token
                pl.BlockSpec((TN, M_rev), lambda i: (i, 0)),        # revert idx
                pl.BlockSpec((TN, M_in, Dp), lambda i: (i, 0, 0)),  # temporal blk
            ],
            out_specs=tuple(pl.BlockSpec((TN, Dp), lambda i: (i, 0))
                            for _ in range(M_out)),
        ),
        compiler_params=pltpu.CompilerParams(
            dimension_semantics=("parallel",),   # shards grid across TCs (v7x)
            vmem_limit_bytes=int(vmem_limit),
        ),
    )(mask, idx, x)

    result = {}
    for n, col in enumerate(temporal_cols):
        o = outs[n]
        if Dp != D:
            o = o[:, :D]
        result[col] = o.reshape(B, S, D)
    return result


def _reference(temporal_block, revert_idx, mask_token):
    """Pure-JAX reference mirroring the PyTorch forward."""
    global_seq = temporal_block[:, :, :1, :]
    valid_seq = temporal_block[:, :, 1:, :]
    B, S, Mv, D = valid_seq.shape
    n_mask = revert_idx.shape[-1] - Mv
    mt = jnp.broadcast_to(jnp.asarray(mask_token).reshape(1, 1, 1, D),
                          (B, S, n_mask, D))
    padded = jnp.concatenate([valid_seq, mt], axis=-2)
    gathered = jnp.take_along_axis(padded, revert_idx[..., None], axis=-2)
    return jnp.concatenate([global_seq, gathered], axis=-2)


if __name__ == "__main__":
    key = jax.random.PRNGKey(0)

    def run_case(B, S, D, M_valid, M_rev, block_rows_list):
        kx, km, kp = jax.random.split(
            jax.random.fold_in(key, B * 100000 + S * 1000 + D), 3)
        cols = ["global"] + [f"c{j}" for j in range(M_rev)]
        tb = jax.random.normal(kx, (B, S, 1 + M_valid, D), dtype=jnp.float32)
        mt = jax.random.normal(km, (1, D), dtype=jnp.float32)
        # revert_idx: per-(b, s) permutation of [0, M_rev) as masking produces.
        perm_keys = jax.random.split(kp, B * S)
        ridx = jax.vmap(lambda k: jax.random.permutation(k, M_rev))(perm_keys)
        ridx = ridx.reshape(B, S, M_rev).astype(jnp.int32)

        ref = _reference(tb, ridx, mt)
        for br in block_rows_list:
            out = temporal_revert(tb, ridx, mt, cols, block_rows=br)
            out = jax.tree_util.tree_map(jax.block_until_ready, out)
            for n, col in enumerate(cols):
                assert out[col].shape == (B, S, D), (col, out[col].shape)
                assert jnp.array_equal(out[col], ref[:, :, n, :]), (col, br, B, S, D)

    # Lane-dense D, N a multiple of 8: default picker and forced multi-step grid.
    run_case(B=2, S=16, D=128, M_valid=3, M_rev=5, block_rows_list=[None, 8])
    # Awkward N (B*S = 26 -> partial last block via cdiv masking) and D not a
    # multiple of 128 (exercises the lane-padding path).
    run_case(B=2, S=13, D=96, M_valid=2, M_rev=4, block_rows_list=[8])

    print("KERNEL_OK")
</pallas_src>

<mosaic_0001>
module attributes {stable_mosaic.version = 11 : i64} {
  func.func @_temporal_revert_kernel(%arg0: i32, %arg1: memref<1x128xf32, #tpu.memory_space<vmem>>, %arg2: memref<32x5xi32, #tpu.memory_space<vmem>>, %arg3: memref<32x4x128xf32, #tpu.memory_space<vmem>>, %arg4: memref<32x128xf32, #tpu.memory_space<vmem>>, %arg5: memref<32x128xf32, #tpu.memory_space<vmem>>, %arg6: memref<32x128xf32, #tpu.memory_space<vmem>>, %arg7: memref<32x128xf32, #tpu.memory_space<vmem>>, %arg8: memref<32x128xf32, #tpu.memory_space<vmem>>, %arg9: memref<32x128xf32, #tpu.memory_space<vmem>>) attributes {dimension_semantics = [#tpu.dimension_semantics<parallel>], iteration_bounds = array<i64: 1>, scalar_prefetch = 0 : i64, scratch_operands = 0 : i64, tpu.core_type = #tpu.core_type<tc>, window_params = [{pipeline_mode = #tpu.pipeline_mode<synchronous>, transform_indices = @transform_0, window_bounds = array<i64: 1, 128>}, {transform_indices = @transform_1, window_bounds = array<i64: 32, 5>}, {transform_indices = @transform_2, window_bounds = array<i64: 32, 4, 128>}, {transform_indices = @transform_3, window_bounds = array<i64: 32, 128>}, {transform_indices = @transform_4, window_bounds = array<i64: 32, 128>}, {transform_indices = @transform_5, window_bounds = array<i64: 32, 128>}, {transform_indices = @transform_6, window_bounds = array<i64: 32, 128>}, {transform_indices = @transform_7, window_bounds = array<i64: 32, 128>}, {transform_indices = @transform_8, window_bounds = array<i64: 32, 128>}]} {
    %c0 = arith.constant 0 : index
    %c0_0 = arith.constant 0 : index
    %0 = vector.load %arg2[%c0, %c0_0] : memref<32x5xi32, #tpu.memory_space<vmem>>, vector<32x5xi32>
    %c0_1 = arith.constant 0 : index
    %c0_2 = arith.constant 0 : index
    %1 = vector.load %arg1[%c0_1, %c0_2] : memref<1x128xf32, #tpu.memory_space<vmem>>, vector<1x128xf32>
    %c0_3 = arith.constant 0 : index
    %c0_4 = arith.constant 0 : index
    %c0_5 = arith.constant 0 : index
    %2 = vector.load %arg3[%c0_3, %c0_4, %c0_5] : memref<32x4x128xf32, #tpu.memory_space<vmem>>, vector<32x1x128xf32>
    %3 = vector.shape_cast %2 : vector<32x1x128xf32> to vector<32x128xf32>
    %c0_6 = arith.constant 0 : index
    %c0_7 = arith.constant 0 : index
    %4 = vector.load %arg4[%c0_6, %c0_7] : memref<32x128xf32, #tpu.memory_space<vmem>>, vector<32x128xf32>
    tpu.vector_store %arg4[%c0_6, %c0_7], %3 {strides = array<i32>} : memref<32x128xf32, #tpu.memory_space<vmem>>, vector<32x128xf32>,
    %c0_8 = arith.constant 0 : index
    %c1 = arith.constant 1 : index
    %c0_9 = arith.constant 0 : index
    %5 = vector.load %arg3[%c0_8, %c1, %c0_9] : memref<32x4x128xf32, #tpu.memory_space<vmem>>, vector<32x1x128xf32>
    %6 = vector.shape_cast %5 : vector<32x1x128xf32> to vector<32x128xf32>
    %c0_10 = arith.constant 0 : index
    %c2 = arith.constant 2 : index
    %c0_11 = arith.constant 0 : index
    %7 = vector.load %arg3[%c0_10, %c2, %c0_11] : memref<32x4x128xf32, #tpu.memory_space<vmem>>, vector<32x1x128xf32>
    %8 = vector.shape_cast %7 : vector<32x1x128xf32> to vector<32x128xf32>
    %c0_12 = arith.constant 0 : index
    %c3 = arith.constant 3 : index
    %c0_13 = arith.constant 0 : index
    %9 = vector.load %arg3[%c0_12, %c3, %c0_13] : memref<32x4x128xf32, #tpu.memory_space<vmem>>, vector<32x1x128xf32>
    %10 = vector.shape_cast %9 : vector<32x1x128xf32> to vector<32x128xf32>
    %11 = vector.extract_strided_slice %0 {offsets = [0, 0], sizes = [32, 1], strides = [1, 1]} : vector<32x5xi32> to vector<32x1xi32>
    %c0_i32 = arith.constant 0 : i32
    %12 = vector.broadcast %c0_i32 : i32 to vector<32x1xi32>
    %13 = arith.cmpi eq, %11, %12 : vector<32x1xi32>
    %14 = vector.shape_cast %13 : vector<32x1xi1> to vector<32x1xi1>
    %15 = vector.broadcast %14 : vector<32x1xi1> to vector<32x128xi1>
    %16 = vector.shape_cast %1 : vector<1x128xf32> to vector<1x128xf32>
    %17 = vector.broadcast %16 : vector<1x128xf32> to vector<32x128xf32>
    %18 = arith.select %15, %6, %17 : vector<32x128xi1>, vector<32x128xf32>
    %c1_i32 = arith.constant 1 : i32
    %19 = vector.broadcast %c1_i32 : i32 to vector<32x1xi32>
    %20 = arith.cmpi eq, %11, %19 : vector<32x1xi32>
    %21 = vector.shape_cast %20 : vector<32x1xi1> to vector<32x1xi1>
    %22 = vector.broadcast %21 : vector<32x1xi1> to vector<32x128xi1>
    %23 = arith.select %22, %8, %18 : vector<32x128xi1>, vector<32x128xf32>
    %c2_i32 = arith.constant 2 : i32
    %24 = vector.broadcast %c2_i32 : i32 to vector<32x1xi32>
    %25 = arith.cmpi eq, %11, %24 : vector<32x1xi32>
    %26 = vector.shape_cast %25 : vector<32x1xi1> to vector<32x1xi1>
    %27 = vector.broadcast %26 : vector<32x1xi1> to vector<32x128xi1>
    %28 = arith.select %27, %10, %23 : vector<32x128xi1>, vector<32x128xf32>
    %c0_14 = arith.constant 0 : index
    %c0_15 = arith.constant 0 : index
    %29 = vector.load %arg5[%c0_14, %c0_15] : memref<32x128xf32, #tpu.memory_space<vmem>>, vector<32x128xf32>
    tpu.vector_store %arg5[%c0_14, %c0_15], %28 {strides = array<i32>} : memref<32x128xf32, #tpu.memory_space<vmem>>, vector<32x128xf32>,
    %30 = vector.extract_strided_slice %0 {offsets = [0, 1], sizes = [32, 1], strides = [1, 1]} : vector<32x5xi32> to vector<32x1xi32>
    %c0_i32_16 = arith.constant 0 : i32
    %31 = vector.broadcast %c0_i32_16 : i32 to vector<32x1xi32>
    %32 = arith.cmpi eq, %30, %31 : vector<32x1xi32>
    %33 = vector.shape_cast %32 : vector<32x1xi1> to vector<32x1xi1>
    %34 = vector.broadcast %33 : vector<32x1xi1> to vector<32x128xi1>
    %35 = vector.shape_cast %1 : vector<1x128xf32> to vector<1x128xf32>
    %36 = vector.broadcast %35 : vector<1x128xf32> to vector<32x128xf32>
    %37 = arith.select %34, %6, %36 : vector<32x128xi1>, vector<32x128xf32>
    %c1_i32_17 = arith.constant 1 : i32
    %38 = vector.broadcast %c1_i32_17 : i32 to vector<32x1xi32>
    %39 = arith.cmpi eq, %30, %38 : vector<32x1xi32>
    %40 = vector.shape_cast %39 : vector<32x1xi1> to vector<32x1xi1>
    %41 = vector.broadcast %40 : vector<32x1xi1> to vector<32x128xi1>
    %42 = arith.select %41, %8, %37 : vector<32x128xi1>, vector<32x128xf32>
    %c2_i32_18 = arith.constant 2 : i32
    %43 = vector.broadcast %c2_i32_18 : i32 to vector<32x1xi32>
    %44 = arith.cmpi eq, %30, %43 : vector<32x1xi32>
    %45 = vector.shape_cast %44 : vector<32x1xi1> to vector<32x1xi1>
    %46 = vector.broadcast %45 : vector<32x1xi1> to vector<32x128xi1>
    %47 = arith.select %46, %10, %42 : vector<32x128xi1>, vector<32x128xf32>
    %c0_19 = arith.constant 0 : index
    %c0_20 = arith.constant 0 : index
    %48 = vector.load %arg6[%c0_19, %c0_20] : memref<32x128xf32, #tpu.memory_space<vmem>>, vector<32x128xf32>
    tpu.vector_store %arg6[%c0_19, %c0_20], %47 {strides = array<i32>} : memref<32x128xf32, #tpu.memory_space<vmem>>, vector<32x128xf32>,
    %49 = vector.extract_strided_slice %0 {offsets = [0, 2], sizes = [32, 1], strides = [1, 1]} : vector<32x5xi32> to vector<32x1xi32>
    %c0_i32_21 = arith.constant 0 : i32
    %50 = vector.broadcast %c0_i32_21 : i32 to vector<32x1xi32>
    %51 = arith.cmpi eq, %49, %50 : vector<32x1xi32>
    %52 = vector.shape_cast %51 : vector<32x1xi1> to vector<32x1xi1>
    %53 = vector.broadcast %52 : vector<32x1xi1> to vector<32x128xi1>
    %54 = vector.shape_cast %1 : vector<1x128xf32> to vector<1x128xf32>
    %55 = vector.broadcast %54 : vector<1x128xf32> to vector<32x128xf32>
    %56 = arith.select %53, %6, %55 : vector<32x128xi1>, vector<32x128xf32>
    %c1_i32_22 = arith.constant 1 : i32
    %57 = vector.broadcast %c1_i32_22 : i32 to vector<32x1xi32>
    %58 = arith.cmpi eq, %49, %57 : vector<32x1xi32>
    %59 = vector.shape_cast %58 : vector<32x1xi1> to vector<32x1xi1>
    %60 = vector.broadcast %59 : vector<32x1xi1> to vector<32x128xi1>
    %61 = arith.select %60, %8, %56 : vector<32x128xi1>, vector<32x128xf32>
    %c2_i32_23 = arith.constant 2 : i32
    %62 = vector.broadcast %c2_i32_23 : i32 to vector<32x1xi32>
    %63 = arith.cmpi eq, %49, %62 : vector<32x1xi32>
    %64 = vector.shape_cast %63 : vector<32x1xi1> to vector<32x1xi1>
    %65 = vector.broadcast %64 : vector<32x1xi1> to vector<32x128xi1>
    %66 = arith.select %65, %10, %61 : vector<32x128xi1>, vector<32x128xf32>
    %c0_24 = arith.constant 0 : index
    %c0_25 = arith.constant 0 : index
    %67 = vector.load %arg7[%c0_24, %c0_25] : memref<32x128xf32, #tpu.memory_space<vmem>>, vector<32x128xf32>
    tpu.vector_store %arg7[%c0_24, %c0_25], %66 {strides = array<i32>} : memref<32x128xf32, #tpu.memory_space<vmem>>, vector<32x128xf32>,
    %68 = vector.extract_strided_slice %0 {offsets = [0, 3], sizes = [32, 1], strides = [1, 1]} : vector<32x5xi32> to vector<32x1xi32>
    %c0_i32_26 = arith.constant 0 : i32
    %69 = vector.broadcast %c0_i32_26 : i32 to vector<32x1xi32>
    %70 = arith.cmpi eq, %68, %69 : vector<32x1xi32>
    %71 = vector.shape_cast %70 : vector<32x1xi1> to vector<32x1xi1>
    %72 = vector.broadcast %71 : vector<32x1xi1> to vector<32x128xi1>
    %73 = vector.shape_cast %1 : vector<1x128xf32> to vector<1x128xf32>
    %74 = vector.broadcast %73 : vector<1x128xf32> to vector<32x128xf32>
    %75 = arith.select %72, %6, %74 : vector<32x128xi1>, vector<32x128xf32>
    %c1_i32_27 = arith.constant 1 : i32
    %76 = vector.broadcast %c1_i32_27 : i32 to vector<32x1xi32>
    %77 = arith.cmpi eq, %68, %76 : vector<32x1xi32>
    %78 = vector.shape_cast %77 : vector<32x1xi1> to vector<32x1xi1>
    %79 = vector.broadcast %78 : vector<32x1xi1> to vector<32x128xi1>
    %80 = arith.select %79, %8, %75 : vector<32x128xi1>, vector<32x128xf32>
    %c2_i32_28 = arith.constant 2 : i32
    %81 = vector.broadcast %c2_i32_28 : i32 to vector<32x1xi32>
    %82 = arith.cmpi eq, %68, %81 : vector<32x1xi32>
    %83 = vector.shape_cast %82 : vector<32x1xi1> to vector<32x1xi1>
    %84 = vector.broadcast %83 : vector<32x1xi1> to vector<32x128xi1>
    %85 = arith.select %84, %10, %80 : vector<32x128xi1>, vector<32x128xf32>
    %c0_29 = arith.constant 0 : index
    %c0_30 = arith.constant 0 : index
    %86 = vector.load %arg8[%c0_29, %c0_30] : memref<32x128xf32, #tpu.memory_space<vmem>>, vector<32x128xf32>
    tpu.vector_store %arg8[%c0_29, %c0_30], %85 {strides = array<i32>} : memref<32x128xf32, #tpu.memory_space<vmem>>, vector<32x128xf32>,
    %87 = vector.extract_strided_slice %0 {offsets = [0, 4], sizes = [32, 1], strides = [1, 1]} : vector<32x5xi32> to vector<32x1xi32>
    %c0_i32_31 = arith.constant 0 : i32
    %88 = vector.broadcast %c0_i32_31 : i32 to vector<32x1xi32>
    %89 = arith.cmpi eq, %87, %88 : vector<32x1xi32>
    %90 = vector.shape_cast %89 : vector<32x1xi1> to vector<32x1xi1>
    %91 = vector.broadcast %90 : vector<32x1xi1> to vector<32x128xi1>
    %92 = vector.shape_cast %1 : vector<1x128xf32> to vector<1x128xf32>
    %93 = vector.broadcast %92 : vector<1x128xf32> to vector<32x128xf32>
    %94 = arith.select %91, %6, %93 : vector<32x128xi1>, vector<32x128xf32>
    %c1_i32_32 = arith.constant 1 : i32
    %95 = vector.broadcast %c1_i32_32 : i32 to vector<32x1xi32>
    %96 = arith.cmpi eq, %87, %95 : vector<32x1xi32>
    %97 = vector.shape_cast %96 : vector<32x1xi1> to vector<32x1xi1>
    %98 = vector.broadcast %97 : vector<32x1xi1> to vector<32x128xi1>
    %99 = arith.select %98, %8, %94 : vector<32x128xi1>, vector<32x128xf32>
    %c2_i32_33 = arith.constant 2 : i32
    %100 = vector.broadcast %c2_i32_33 : i32 to vector<32x1xi32>
    %101 = arith.cmpi eq, %87, %100 : vector<32x1xi32>
    %102 = vector.shape_cast %101 : vector<32x1xi1> to vector<32x1xi1>
    %103 = vector.broadcast %102 : vector<32x1xi1> to vector<32x128xi1>
    %104 = arith.select %103, %10, %99 : vector<32x128xi1>, vector<32x128xf32>
    %c0_34 = arith.constant 0 : index
    %c0_35 = arith.constant 0 : index
    %105 = vector.load %arg9[%c0_34, %c0_35] : memref<32x128xf32, #tpu.memory_space<vmem>>, vector<32x128xf32>
    tpu.vector_store %arg9[%c0_34, %c0_35], %104 {strides = array<i32>} : memref<32x128xf32, #tpu.memory_space<vmem>>, vector<32x128xf32>,
    return
  }
  func.func @transform_0(%arg0: i32) -> (i32, i32) {
    %c0_i32 = arith.constant 0 : i32
    %c0_i32_0 = arith.constant 0 : i32
    %c0_i32_1 = arith.constant 0 : i32
    return %c0_i32, %c0_i32_0 : i32, i32
  }
  func.func @transform_1(%arg0: i32) -> (i32, i32) {
    %c0_i32 = arith.constant 0 : i32
    %c0_i32_0 = arith.constant 0 : i32
    return %arg0, %c0_i32 : i32, i32
  }
  func.func @transform_2(%arg0: i32) -> (i32, i32, i32) {
    %c0_i32 = arith.constant 0 : i32
    %c0_i32_0 = arith.constant 0 : i32
    %c0_i32_1 = arith.constant 0 : i32
    return %arg0, %c0_i32, %c0_i32_0 : i32, i32, i32
  }
  func.func @transform_3(%arg0: i32) -> (i32, i32) {
    %c0_i32 = arith.constant 0 : i32
    %c0_i32_0 = arith.constant 0 : i32
    return %arg0, %c0_i32 : i32, i32
  }
  func.func @transform_4(%arg0: i32) -> (i32, i32) {
    %c0_i32 = arith.constant 0 : i32
    %c0_i32_0 = arith.constant 0 : i32
    return %arg0, %c0_i32 : i32, i32
  }
  func.func @transform_5(%arg0: i32) -> (i32, i32) {
    %c0_i32 = arith.constant 0 : i32
    %c0_i32_0 = arith.constant 0 : i32
    return %arg0, %c0_i32 : i32, i32
  }
  func.func @transform_6(%arg0: i32) -> (i32, i32) {
    %c0_i32 = arith.constant 0 : i32
    %c0_i32_0 = arith.constant 0 : i32
    return %arg0, %c0_i32 : i32, i32
  }
  func.func @transform_7(%arg0: i32) -> (i32, i32) {
    %c0_i32 = arith.constant 0 : i32
    %c0_i32_0 = arith.constant 0 : i32
    return %arg0, %c0_i32 : i32, i32
  }
  func.func @transform_8(%arg0: i32) -> (i32, i32) {
    %c0_i32 = arith.constant 0 : i32
    %c0_i32_0 = arith.constant 0 : i32
    return %arg0, %c0_i32 : i32, i32
  }
}

</mosaic_0001>

<llo_original>
// kernel: tpu_custom_call.1
$region0: #{tpu_custom_call.1}
  #allocation0 [shape = 'u32[]', space=smem, size = 0x4, offset = 0x4, fixed_abs, tag = 'smem constant byte address 0x4 - core index']
  #allocation1 [shape = 'u32[72,128]{1,0:T(1,128)}', space=vmem, size = 0x9000, scoped, tag = 'internal scratch']
  %s0 = inlined_call_operand.vmem [shape: f32[1,128], index: 0, kind: input, shape index: {}]
  %s1 = inlined_call_operand.vmem [shape: s32[32,5], index: 1, kind: input, shape index: {}]
  %s2 = inlined_call_operand.hbm [shape: f32[32,4,128], index: 2, kind: input, shape index: {}]
  %s3 = inlined_call_operand.hbm [shape: f32[32,128], index: 3, kind: output, shape index: {0}]
  %s4 = inlined_call_operand.hbm [shape: f32[32,128], index: 4, kind: output, shape index: {1}]
  %s5 = inlined_call_operand.hbm [shape: f32[32,128], index: 5, kind: output, shape index: {2}]
  %s6 = inlined_call_operand.hbm [shape: f32[32,128], index: 6, kind: output, shape index: {3}]
  %s7 = inlined_call_operand.hbm [shape: f32[32,128], index: 7, kind: output, shape index: {4}]
  %s8 = inlined_call_operand.hbm [shape: f32[32,128], index: 8, kind: output, shape index: {5}]
  %9 = xla_tuple %s3, %s4, %s5, %s6, %s7, %s8
  %s10 = sld [smem:[#allocation0]]
  $region66: #{tpu_custom_call.1} parent=0
    _
  %s12 = ssub.s32 1, %s10
  %s13 = scalar_select 0, %s12, %s10
  $region1: #{tpu_custom_call.1} parent=0
    #allocation2 [shape = 'u8[65536]{0}', space=vmem, size = 0x10000, scoped, tag = 'input window, operand 2, single buffered']
    #allocation3 [shape = 's32[1]{0}', space=sflag, size = 0x4, scoped, tag = 'scoped memory for tpu_custom_call.1']
    #allocation4 [shape = 's32[1]{0}', space=sflag, size = 0x4, scoped, tag = 'scoped memory for tpu_custom_call.1']
    #allocation5 [shape = 'u8[16384]{0}', space=vmem, size = 0x4000, scoped, tag = 'output window, operand 0, single buffered']
    #allocation6 [shape = 'u8[16384]{0}', space=vmem, size = 0x4000, scoped, tag = 'output window, operand 1, single buffered']
    #allocation7 [shape = 's32[1]{0}', space=sflag, size = 0x4, scoped, tag = 'scoped memory for tpu_custom_call.1']
    #allocation8 [shape = 'u8[16384]{0}', space=vmem, size = 0x4000, scoped, tag = 'output window, operand 2, single buffered']
    #allocation9 [shape = 'u8[16384]{0}', space=vmem, size = 0x4000, scoped, tag = 'output window, operand 3, single buffered']
    #allocation10 [shape = 's32[1]{0}', space=sflag, size = 0x4, scoped, tag = 'scoped memory for tpu_custom_call.1']
    #allocation11 [shape = 'u8[16384]{0}', space=vmem, size = 0x4000, scoped, tag = 'output window, operand 4, single buffered']
    #allocation12 [shape = 'u8[16384]{0}', space=vmem, size = 0x4000, scoped, tag = 'output window, operand 5, single buffered']
    #allocation13 [shape = 's32[1]{0}', space=sflag, size = 0x4, scoped, tag = 'scoped memory for tpu_custom_call.1']
    %14 = vsyncpa [#allocation3], 0
    %15 = vsyncpa [#allocation4], 0
    %16 = vsyncpa [#allocation7], 0
    %17 = vsyncpa [#allocation10], 0
    %18 = vsyncpa [#allocation13], 0
    // Predicated region
    $region2: #{tpu_custom_call.1} parent=1 // pred_check
      _
    $region3: #{tpu_custom_call.1} parent=1 // pred_check_branch
      %20 = sbr.rel (0) target = $region5
    $region4: #{tpu_custom_call.1} parent=1 // pred_region
      _
    $region5: #{tpu_custom_call.1} parent=1 // pred_fallthru
      _
    // Predicated region
    $region6: #{tpu_custom_call.1} parent=1 // pred_check
      _
    $region7: #{tpu_custom_call.1} parent=1 // pred_check_branch
      %22 = sbr.rel (0) target = $region9
    $region8: #{tpu_custom_call.1} parent=1 // pred_region
      _
    $region9: #{tpu_custom_call.1} parent=1 // pred_fallthru
      _
    // Predicated region
    $region10: #{tpu_custom_call.1} parent=1 // pred_check
      _
    $region11: #{tpu_custom_call.1} parent=1 // pred_check_branch
      %24 = sbr.rel (0) target = $region13
    $region12: #{tpu_custom_call.1} parent=1 // pred_region
      %26 = vsyncadd [#allocation3], 0
      %s27 = sshll.u32 %s2, 4
      %s28 = int_to_ptr.hbm [resolvable:$true] %s27
      %s29 = sshll.u32 [#allocation2], 4
      %s30 = int_to_ptr.vmem [resolvable:$true] %s29
      %35 = dma.hbm_to_vmem [thread:$0]  %s28, 2048, %s30, [#allocation3], 64, 64, 4
    $region13: #{tpu_custom_call.1} parent=1 // pred_fallthru
      _
    // Predicated region
    $region14: #{tpu_custom_call.1} parent=1 // pred_check
      _
    $region15: #{tpu_custom_call.1} parent=1 // pred_check_branch
      %37 = sbr.rel (0) target = $region17
    $region16: #{tpu_custom_call.1} parent=1 // pred_region
      %39 = dma.done [#allocation3], 2048
    $region17: #{tpu_custom_call.1} parent=1 // pred_fallthru
      _
    %v40 = vld [vmem:[%s1] sm:$0xff]
    %v41 = vld [vmem:[%s1 + $0x8] sm:$0xff]
    %v42 = vld [vmem:[%s1 + $0x10] sm:$0xff]
    %v43 = vld [vmem:[%s1 + $0x18] sm:$0xff]
    %v44 = vld [vmem:[%s0] sm:$0x1]
    %v45 = vld [vmem:[#allocation2] sm:$0x1]
    %v46 = vld [vmem:[#allocation2 + $0x4] sm:$0x1]
    %v47 = vld [vmem:[#allocation2 + $0x8] sm:$0x1]
    %v48 = vld [vmem:[#allocation2 + $0xc] sm:$0x1]
    %v49 = vld [vmem:[#allocation2 + $0x10] sm:$0x1]
    %v50 = vld [vmem:[#allocation2 + $0x14] sm:$0x1]
    %v51 = vld [vmem:[#allocation2 + $0x18] sm:$0x1]
    %v52 = vld [vmem:[#allocation2 + $0x1c] sm:$0x1]
    %v53 = vld [vmem:[#allocation2 + $0x20] sm:$0x1]
    %v54 = vld [vmem:[#allocation2 + $0x24] sm:$0x1]
    %v55 = vld [vmem:[#allocation2 + $0x28] sm:$0x1]
    %v56 = vld [vmem:[#allocation2 + $0x2c] sm:$0x1]
    %v57 = vld [vmem:[#allocation2 + $0x30] sm:$0x1]
    %v58 = vld [vmem:[#allocation2 + $0x34] sm:$0x1]
    %v59 = vld [vmem:[#allocation2 + $0x38] sm:$0x1]
    %v60 = vld [vmem:[#allocation2 + $0x3c] sm:$0x1]
    %v61 = vld [vmem:[#allocation2 + $0x40] sm:$0x1]
    %v62 = vld [vmem:[#allocation2 + $0x44] sm:$0x1]
    %v63 = vld [vmem:[#allocation2 + $0x48] sm:$0x1]
    %v64 = vld [vmem:[#allocation2 + $0x4c] sm:$0x1]
    %v65 = vld [vmem:[#allocation2 + $0x50] sm:$0x1]
    %v66 = vld [vmem:[#allocation2 + $0x54] sm:$0x1]
    %v67 = vld [vmem:[#allocation2 + $0x58] sm:$0x1]
    %v68 = vld [vmem:[#allocation2 + $0x5c] sm:$0x1]
    %v69 = vld [vmem:[#allocation2 + $0x60] sm:$0x1]
    %v70 = vld [vmem:[#allocation2 + $0x64] sm:$0x1]
    %v71 = vld [vmem:[#allocation2 + $0x68] sm:$0x1]
    %v72 = vld [vmem:[#allocation2 + $0x6c] sm:$0x1]
    %v73 = vld [vmem:[#allocation2 + $0x70] sm:$0x1]
    %v74 = vld [vmem:[#allocation2 + $0x74] sm:$0x1]
    %v75 = vld [vmem:[#allocation2 + $0x78] sm:$0x1]
    %v76 = vld [vmem:[#allocation2 + $0x7c] sm:$0x1]
    %v109 = vrot.slane %v46, 7
    %vm110 = vcmask 1041409
    %v111 = vsel %vm110, %v109, %v45
    %v112 = vrot.slane %v47, 6
    %vm113 = vcmask 1042434
    %v114 = vsel %vm113, %v112, %v111
    %v115 = vrot.slane %v48, 5
    %vm116 = vcmask 1043459
    %v117 = vsel %vm116, %v115, %v114
    %v118 = vrot.slane %v49, 4
    %vm119 = vcmask 1044484
    %v120 = vsel %vm119, %v118, %v117
    %v121 = vrot.slane %v50, 3
    %vm122 = vcmask 1045509
    %v123 = vsel %vm122, %v121, %v120
    %v124 = vrot.slane %v51, 2
    %vm125 = vcmask 1046534
    %v126 = vsel %vm125, %v124, %v123
    %v127 = vrot.slane %v52, 1
    %vm128 = vcmask 1047559
    %v129 = vsel %vm128, %v127, %v126
    %v130 = vrot.slane %v54, 7
    %v131 = vsel %vm110, %v130, %v53
    %v132 = vrot.slane %v55, 6
    %v133 = vsel %vm113, %v132, %v131
    %v134 = vrot.slane %v56, 5
    %v135 = vsel %vm116, %v134, %v133
    %v136 = vrot.slane %v57, 4
    %v137 = vsel %vm119, %v136, %v135
    %v138 = vrot.slane %v58, 3
    %v139 = vsel %vm122, %v138, %v137
    %v140 = vrot.slane %v59, 2
    %v141 = vsel %vm125, %v140, %v139
    %v142 = vrot.slane %v60, 1
    %v143 = vsel %vm128, %v142, %v141
    %v144 = vrot.slane %v62, 7
    %v145 = vsel %vm110, %v144, %v61
    %v146 = vrot.slane %v63, 6
    %v147 = vsel %vm113, %v146, %v145
    %v148 = vrot.slane %v64, 5
    %v149 = vsel %vm116, %v148, %v147
    %v150 = vrot.slane %v65, 4
    %v151 = vsel %vm119, %v150, %v149
    %v152 = vrot.slane %v66, 3
    %v153 = vsel %vm122, %v152, %v151
    %v154 = vrot.slane %v67, 2
    %v155 = vsel %vm125, %v154, %v153
    %v156 = vrot.slane %v68, 1
    %v157 = vsel %vm128, %v156, %v155
    %v158 = vrot.slane %v70, 7
    %v159 = vsel %vm110, %v158, %v69
    %v160 = vrot.slane %v71, 6
    %v161 = vsel %vm113, %v160, %v159
    %v162 = vrot.slane %v72, 5
    %v163 = vsel %vm116, %v162, %v161
    %v164 = vrot.slane %v73, 4
    %v165 = vsel %vm119, %v164, %v163
    %v166 = vrot.slane %v74, 3
    %v167 = vsel %vm122, %v166, %v165
    %v168 = vrot.slane %v75, 2
    %v169 = vsel %vm125, %v168, %v167
    %v170 = vrot.slane %v76, 1
    %v171 = vsel %vm128, %v170, %v169
    %176 = vst [vmem:[#allocation5] sm:$0xff] %v129
    %177 = vst [vmem:[#allocation5 + $0x8] sm:$0xff] %v143
    %178 = vst [vmem:[#allocation5 + $0x10] sm:$0xff] %v157
    %179 = vst [vmem:[#allocation5 + $0x18] sm:$0xff] %v171
    %v180 = vld [vmem:[#allocation2 + $0x1] sm:$0x1]
    %v181 = vld [vmem:[#allocation2 + $0x5] sm:$0x1]
    %v182 = vld [vmem:[#allocation2 + $0x9] sm:$0x1]
    %v183 = vld [vmem:[#allocation2 + $0xd] sm:$0x1]
    %v184 = vld [vmem:[#allocation2 + $0x11] sm:$0x1]
    %v185 = vld [vmem:[#allocation2 + $0x15] sm:$0x1]
    %v186 = vld [vmem:[#allocation2 + $0x19] sm:$0x1]
    %v187 = vld [vmem:[#allocation2 + $0x1d] sm:$0x1]
    %v188 = vld [vmem:[#allocation2 + $0x21] sm:$0x1]
    %v189 = vld [vmem:[#allocation2 + $0x25] sm:$0x1]
    %v190 = vld [vmem:[#allocation2 + $0x29] sm:$0x1]
    %v191 = vld [vmem:[#allocation2 + $0x2d] sm:$0x1]
    %v192 = vld [vmem:[#allocation2 + $0x31] sm:$0x1]
    %v193 = vld [vmem:[#allocation2 + $0x35] sm:$0x1]
    %v194 = vld [vmem:[#allocation2 + $0x39] sm:$0x1]
    %v195 = vld [vmem:[#allocation2 + $0x3d] sm:$0x1]
    %v196 = vld [vmem:[#allocation2 + $0x41] sm:$0x1]
    %v197 = vld [vmem:[#allocation2 + $0x45] sm:$0x1]
    %v198 = vld [vmem:[#allocation2 + $0x49] sm:$0x1]
    %v199 = vld [vmem:[#allocation2 + $0x4d] sm:$0x1]
    %v200 = vld [vmem:[#allocation2 + $0x51] sm:$0x1]
    %v201 = vld [vmem:[#allocation2 + $0x55] sm:$0x1]
    %v202 = vld [vmem:[#allocation2 + $0x59] sm:$0x1]
    %v203 = vld [vmem:[#allocation2 + $0x5d] sm:$0x1]
    %v204 = vld [vmem:[#allocation2 + $0x61] sm:$0x1]
    %v205 = vld [vmem:[#allocation2 + $0x65] sm:$0x1]
    %v206 = vld [vmem:[#allocation2 + $0x69] sm:$0x1]
    %v207 = vld [vmem:[#allocation2 + $0x6d] sm:$0x1]
    %v208 = vld [vmem:[#allocation2 + $0x71] sm:$0x1]
    %v209 = vld [vmem:[#allocation2 + $0x75] sm:$0x1]
    %v210 = vld [vmem:[#allocation2 + $0x79] sm:$0x1]
    %v211 = vld [vmem:[#allocation2 + $0x7d] sm:$0x1]
    %v212 = vld [vmem:[#allocation2 + $0x2] sm:$0x1]
    %v213 = vld [vmem:[#allocation2 + $0x6] sm:$0x1]
    %v214 = vld [vmem:[#allocation2 + $0xa] sm:$0x1]
    %v215 = vld [vmem:[#allocation2 + $0xe] sm:$0x1]
    %v216 = vld [vmem:[#allocation2 + $0x12] sm:$0x1]
    %v217 = vld [vmem:[#allocation2 + $0x16] sm:$0x1]
    %v218 = vld [vmem:[#allocation2 + $0x1a] sm:$0x1]
    %v219 = vld [vmem:[#allocation2 + $0x1e] sm:$0x1]
    %v220 = vld [vmem:[#allocation2 + $0x22] sm:$0x1]
    %v221 = vld [vmem:[#allocation2 + $0x26] sm:$0x1]
    %v222 = vld [vmem:[#allocation2 + $0x2a] sm:$0x1]
    %v223 = vld [vmem:[#allocation2 + $0x2e] sm:$0x1]
    %v224 = vld [vmem:[#allocation2 + $0x32] sm:$0x1]
    %v225 = vld [vmem:[#allocation2 + $0x36] sm:$0x1]
    %v226 = vld [vmem:[#allocation2 + $0x3a] sm:$0x1]
    %v227 = vld [vmem:[#allocation2 + $0x3e] sm:$0x1]
    %v228 = vld [vmem:[#allocation2 + $0x42] sm:$0x1]
    %v229 = vld [vmem:[#allocation2 + $0x46] sm:$0x1]
    %v230 = vld [vmem:[#allocation2 + $0x4a] sm:$0x1]
    %v231 = vld [vmem:[#allocation2 + $0x4e] sm:$0x1]
    %v232 = vld [vmem:[#allocation2 + $0x52] sm:$0x1]
    %v233 = vld [vmem:[#allocation2 + $0x56] sm:$0x1]
    %v234 = vld [vmem:[#allocation2 + $0x5a] sm:$0x1]
    %v235 = vld [vmem:[#allocation2 + $0x5e] sm:$0x1]
    %v236 = vld [vmem:[#allocation2 + $0x62] sm:$0x1]
    %v237 = vld [vmem:[#allocation2 + $0x66] sm:$0x1]
    %v238 = vld [vmem:[#allocation2 + $0x6a] sm:$0x1]
    %v239 = vld [vmem:[#allocation2 + $0x6e] sm:$0x1]
    %v240 = vld [vmem:[#allocation2 + $0x72] sm:$0x1]
    %v241 = vld [vmem:[#allocation2 + $0x76] sm:$0x1]
    %v242 = vld [vmem:[#allocation2 + $0x7a] sm:$0x1]
    %v243 = vld [vmem:[#allocation2 + $0x7e] sm:$0x1]
    %v244 = vld [vmem:[#allocation2 + $0x3] sm:$0x1]
    %v245 = vld [vmem:[#allocation2 + $0x7] sm:$0x1]
    %v246 = vld [vmem:[#allocation2 + $0xb] sm:$0x1]
    %v247 = vld [vmem:[#allocation2 + $0xf] sm:$0x1]
    %v248 = vld [vmem:[#allocation2 + $0x13] sm:$0x1]
    %v249 = vld [vmem:[#allocation2 + $0x17] sm:$0x1]
    %v250 = vld [vmem:[#allocation2 + $0x1b] sm:$0x1]
    %v251 = vld [vmem:[#allocation2 + $0x1f] sm:$0x1]
    %v252 = vld [vmem:[#allocation2 + $0x23] sm:$0x1]
    %v253 = vld [vmem:[#allocation2 + $0x27] sm:$0x1]
    %v254 = vld [vmem:[#allocation2 + $0x2b] sm:$0x1]
    %v255 = vld [vmem:[#allocation2 + $0x2f] sm:$0x1]
    %v256 = vld [vmem:[#allocation2 + $0x33] sm:$0x1]
    %v257 = vld [vmem:[#allocation2 + $0x37] sm:$0x1]
    %v258 = vld [vmem:[#allocation2 + $0x3b] sm:$0x1]
    %v259 = vld [vmem:[#allocation2 + $0x3f] sm:$0x1]
    %v260 = vld [vmem:[#allocation2 + $0x43] sm:$0x1]
    %v261 = vld [vmem:[#allocation2 + $0x47] sm:$0x1]
    %v262 = vld [vmem:[#allocation2 + $0x4b] sm:$0x1]
    %v263 = vld [vmem:[#allocation2 + $0x4f] sm:$0x1]
    %v264 = vld [vmem:[#allocation2 + $0x53] sm:$0x1]
    %v265 = vld [vmem:[#allocation2 + $0x57] sm:$0x1]
    %v266 = vld [vmem:[#allocation2 + $0x5b] sm:$0x1]
    %v267 = vld [vmem:[#allocation2 + $0x5f] sm:$0x1]
    %v268 = vld [vmem:[#allocation2 + $0x63] sm:$0x1]
    %v269 = vld [vmem:[#allocation2 + $0x67] sm:$0x1]
    %v270 = vld [vmem:[#allocation2 + $0x6b] sm:$0x1]
    %v271 = vld [vmem:[#allocation2 + $0x6f] sm:$0x1]
    %v272 = vld [vmem:[#allocation2 + $0x73] sm:$0x1]
    %v273 = vld [vmem:[#allocation2 + $0x77] sm:$0x1]
    %v274 = vld [vmem:[#allocation2 + $0x7b] sm:$0x1]
    %v275 = vld [vmem:[#allocation2 + $0x7f] sm:$0x1]
    %vm276 = vcmp.eq.s32.totalorder %v40, 0
    %vm277 = vcmp.eq.s32.totalorder %v41, 0
    %vm278 = vcmp.eq.s32.totalorder %v42, 0
    %vm279 = vcmp.eq.s32.totalorder %v43, 0
    %v280 = vsel %vm276, 1, 0
    %v281 = vsel %vm277, 1, 0
    %v282 = vsel %vm278, 1, 0
    %v283 = vsel %vm279, 1, 0
    %284 = vset.pattern.permute.xlu0 0
    %285 = vperm.xlu0 %284, %v280
    %v286 = vpop.permute.xlu0 %285
    %287 = vset.pattern.permute.xlu0 0
    %288 = vperm.xlu0 %287, %v281
    %v289 = vpop.permute.xlu0 %288
    %290 = vset.pattern.permute.xlu0 0
    %291 = vperm.xlu0 %290, %v282
    %v292 = vpop.permute.xlu0 %291
    %293 = vset.pattern.permute.xlu0 0
    %294 = vperm.xlu0 %293, %v283
    %v295 = vpop.permute.xlu0 %294
    %vm296 = vcmp.eq.s32.totalorder %v286, 1
    %vm297 = vcmp.eq.s32.totalorder %v289, 1
    %vm298 = vcmp.eq.s32.totalorder %v292, 1
    %vm299 = vcmp.eq.s32.totalorder %v295, 1
    %v301 = vperm.slane %v44, 0
    %v335 = vrot.slane %v181, 7
    %v336 = vsel %vm110, %v335, %v180
    %v337 = vrot.slane %v182, 6
    %v338 = vsel %vm113, %v337, %v336
    %v339 = vrot.slane %v183, 5
    %v340 = vsel %vm116, %v339, %v338
    %v341 = vrot.slane %v184, 4
    %v342 = vsel %vm119, %v341, %v340
    %v343 = vrot.slane %v185, 3
    %v344 = vsel %vm122, %v343, %v342
    %v345 = vrot.slane %v186, 2
    %v346 = vsel %vm125, %v345, %v344
    %v347 = vrot.slane %v187, 1
    %v348 = vsel %vm128, %v347, %v346
    %v349 = vrot.slane %v189, 7
    %v350 = vsel %vm110, %v349, %v188
    %v351 = vrot.slane %v190, 6
    %v352 = vsel %vm113, %v351, %v350
    %v353 = vrot.slane %v191, 5
    %v354 = vsel %vm116, %v353, %v352
    %v355 = vrot.slane %v192, 4
    %v356 = vsel %vm119, %v355, %v354
    %v357 = vrot.slane %v193, 3
    %v358 = vsel %vm122, %v357, %v356
    %v359 = vrot.slane %v194, 2
    %v360 = vsel %vm125, %v359, %v358
    %v361 = vrot.slane %v195, 1
    %v362 = vsel %vm128, %v361, %v360
    %v363 = vrot.slane %v197, 7
    %v364 = vsel %vm110, %v363, %v196
    %v365 = vrot.slane %v198, 6
    %v366 = vsel %vm113, %v365, %v364
    %v367 = vrot.slane %v199, 5
    %v368 = vsel %vm116, %v367, %v366
    %v369 = vrot.slane %v200, 4
    %v370 = vsel %vm119, %v369, %v368
    %v371 = vrot.slane %v201, 3
    %v372 = vsel %vm122, %v371, %v370
    %v373 = vrot.slane %v202, 2
    %v374 = vsel %vm125, %v373, %v372
    %v375 = vrot.slane %v203, 1
    %v376 = vsel %vm128, %v375, %v374
    %v377 = vrot.slane %v205, 7
    %v378 = vsel %vm110, %v377, %v204
    %v379 = vrot.slane %v206, 6
    %v380 = vsel %vm113, %v379, %v378
    %v381 = vrot.slane %v207, 5
    %v382 = vsel %vm116, %v381, %v380
    %v383 = vrot.slane %v208, 4
    %v384 = vsel %vm119, %v383, %v382
    %v385 = vrot.slane %v209, 3
    %v386 = vsel %vm122, %v385, %v384
    %v387 = vrot.slane %v210, 2
    %v388 = vsel %vm125, %v387, %v386
    %v389 = vrot.slane %v211, 1
    %v390 = vsel %vm128, %v389, %v388
    %v395 = vsel %vm296, %v348, %v301
    %v396 = vsel %vm297, %v362, %v301
    %v397 = vsel %vm298, %v376, %v301
    %v398 = vsel %vm299, %v390, %v301
    %vm399 = vcmp.eq.s32.totalorder %v40, 1
    %vm400 = vcmp.eq.s32.totalorder %v41, 1
    %vm401 = vcmp.eq.s32.totalorder %v42, 1
    %vm402 = vcmp.eq.s32.totalorder %v43, 1
    %v403 = vsel %vm399, 1, 0
    %v404 = vsel %vm400, 1, 0
    %v405 = vsel %vm401, 1, 0
    %v406 = vsel %vm402, 1, 0
    %407 = vset.pattern.permute.xlu0 0
    %408 = vperm.xlu0 %407, %v403
    %v409 = vpop.permute.xlu0 %408
    %410 = vset.pattern.permute.xlu0 0
    %411 = vperm.xlu0 %410, %v404
    %v412 = vpop.permute.xlu0 %411
    %413 = vset.pattern.permute.xlu0 0
    %414 = vperm.xlu0 %413, %v405
    %v415 = vpop.permute.xlu0 %414
    %416 = vset.pattern.permute.xlu0 0
    %417 = vperm.xlu0 %416, %v406
    %v418 = vpop.permute.xlu0 %417
    %vm419 = vcmp.eq.s32.totalorder %v409, 1
    %vm420 = vcmp.eq.s32.totalorder %v412, 1
    %vm421 = vcmp.eq.s32.totalorder %v415, 1
    %vm422 = vcmp.eq.s32.totalorder %v418, 1
    %v455 = vrot.slane %v213, 7
    %v456 = vsel %vm110, %v455, %v212
    %v457 = vrot.slane %v214, 6
    %v458 = vsel %vm113, %v457, %v456
    %v459 = vrot.slane %v215, 5
    %v460 = vsel %vm116, %v459, %v458
    %v461 = vrot.slane %v216, 4
    %v462 = vsel %vm119, %v461, %v460
    %v463 = vrot.slane %v217, 3
    %v464 = vsel %vm122, %v463, %v462
    %v465 = vrot.slane %v218, 2
    %v466 = vsel %vm125, %v465, %v464
    %v467 = vrot.slane %v219, 1
    %v468 = vsel %vm128, %v467, %v466
    %v469 = vrot.slane %v221, 7
    %v470 = vsel %vm110, %v469, %v220
    %v471 = vrot.slane %v222, 6
    %v472 = vsel %vm113, %v471, %v470
    %v473 = vrot.slane %v223, 5
    %v474 = vsel %vm116, %v473, %v472
    %v475 = vrot.slane %v224, 4
    %v476 = vsel %vm119, %v475, %v474
    %v477 = vrot.slane %v225, 3
    %v478 = vsel %vm122, %v477, %v476
    %v479 = vrot.slane %v226, 2
    %v480 = vsel %vm125, %v479, %v478
    %v481 = vrot.slane %v227, 1
    %v482 = vsel %vm128, %v481, %v480
    %v483 = vrot.slane %v229, 7
    %v484 = vsel %vm110, %v483, %v228
    %v485 = vrot.slane %v230, 6
    %v486 = vsel %vm113, %v485, %v484
    %v487 = vrot.slane %v231, 5
    %v488 = vsel %vm116, %v487, %v486
    %v489 = vrot.slane %v232, 4
    %v490 = vsel %vm119, %v489, %v488
    %v491 = vrot.slane %v233, 3
    %v492 = vsel %vm122, %v491, %v490
    %v493 = vrot.slane %v234, 2
    %v494 = vsel %vm125, %v493, %v492
    %v495 = vrot.slane %v235, 1
    %v496 = vsel %vm128, %v495, %v494
    %v497 = vrot.slane %v237, 7
    %v498 = vsel %vm110, %v497, %v236
    %v499 = vrot.slane %v238, 6
    %v500 = vsel %vm113, %v499, %v498
    %v501 = vrot.slane %v239, 5
    %v502 = vsel %vm116, %v501, %v500
    %v503 = vrot.slane %v240, 4
    %v504 = vsel %vm119, %v503, %v502
    %v505 = vrot.slane %v241, 3
    %v506 = vsel %vm122, %v505, %v504
    %v507 = vrot.slane %v242, 2
    %v508 = vsel %vm125, %v507, %v506
    %v509 = vrot.slane %v243, 1
    %v510 = vsel %vm128, %v509, %v508
    %v515 = vsel %vm419, %v468, %v395
    %v516 = vsel %vm420, %v482, %v396
    %v517 = vsel %vm421, %v496, %v397
    %v518 = vsel %vm422, %v510, %v398
    %vm519 = vcmp.eq.s32.totalorder %v40, 2
    %vm520 = vcmp.eq.s32.totalorder %v41, 2
    %vm521 = vcmp.eq.s32.totalorder %v42, 2
    %vm522 = vcmp.eq.s32.totalorder %v43, 2
    %v523 = vsel %vm519, 1, 0
    %v524 = vsel %vm520, 1, 0
    %v525 = vsel %vm521, 1, 0
    %v526 = vsel %vm522, 1, 0
    %527 = vset.pattern.permute.xlu0 0
    %528 = vperm.xlu0 %527, %v523
    %v529 = vpop.permute.xlu0 %528
    %530 = vset.pattern.permute.xlu0 0
    %531 = vperm.xlu0 %530, %v524
    %v532 = vpop.permute.xlu0 %531
    %533 = vset.pattern.permute.xlu0 0
    %534 = vperm.xlu0 %533, %v525
    %v535 = vpop.permute.xlu0 %534
    %536 = vset.pattern.permute.xlu0 0
    %537 = vperm.xlu0 %536, %v526
    %v538 = vpop.permute.xlu0 %537
    %vm539 = vcmp.eq.s32.totalorder %v529, 1
    %vm540 = vcmp.eq.s32.totalorder %v532, 1
    %vm541 = vcmp.eq.s32.totalorder %v535, 1
    %vm542 = vcmp.eq.s32.totalorder %v538, 1
    %v575 = vrot.slane %v245, 7
    %v576 = vsel %vm110, %v575, %v244
    %v577 = vrot.slane %v246, 6
    %v578 = vsel %vm113, %v577, %v576
    %v579 = vrot.slane %v247, 5
    %v580 = vsel %vm116, %v579, %v578
    %v581 = vrot.slane %v248, 4
    %v582 = vsel %vm119, %v581, %v580
    %v583 = vrot.slane %v249, 3
    %v584 = vsel %vm122, %v583, %v582
    %v585 = vrot.slane %v250, 2
    %v586 = vsel %vm125, %v585, %v584
    %v587 = vrot.slane %v251, 1
    %v588 = vsel %vm128, %v587, %v586
    %v589 = vrot.slane %v253, 7
    %v590 = vsel %vm110, %v589, %v252
    %v591 = vrot.slane %v254, 6
    %v592 = vsel %vm113, %v591, %v590
    %v593 = vrot.slane %v255, 5
    %v594 = vsel %vm116, %v593, %v592
    %v595 = vrot.slane %v256, 4
    %v596 = vsel %vm119, %v595, %v594
    %v597 = vrot.slane %v257, 3
    %v598 = vsel %vm122, %v597, %v596
    %v599 = vrot.slane %v258, 2
    %v600 = vsel %vm125, %v599, %v598
    %v601 = vrot.slane %v259, 1
    %v602 = vsel %vm128, %v601, %v600
    %v603 = vrot.slane %v261, 7
    %v604 = vsel %vm110, %v603, %v260
    %v605 = vrot.slane %v262, 6
    %v606 = vsel %vm113, %v605, %v604
    %v607 = vrot.slane %v263, 5
    %v608 = vsel %vm116, %v607, %v606
    %v609 = vrot.slane %v264, 4
    %v610 = vsel %vm119, %v609, %v608
    %v611 = vrot.slane %v265, 3
    %v612 = vsel %vm122, %v611, %v610
    %v613 = vrot.slane %v266, 2
    %v614 = vsel %vm125, %v613, %v612
    %v615 = vrot.slane %v267, 1
    %v616 = vsel %vm128, %v615, %v614
    %v617 = vrot.slane %v269, 7
    %v618 = vsel %vm110, %v617, %v268
    %v619 = vrot.slane %v270, 6
    %v620 = vsel %vm113, %v619, %v618
    %v621 = vrot.slane %v271, 5
    %v622 = vsel %vm116, %v621, %v620
    %v623 = vrot.slane %v272, 4
    %v624 = vsel %vm119, %v623, %v622
    %v625 = vrot.slane %v273, 3
    %v626 = vsel %vm122, %v625, %v624
    %v627 = vrot.slane %v274, 2
    %v628 = vsel %vm125, %v627, %v626
    %v629 = vrot.slane %v275, 1
    %v630 = vsel %vm128, %v629, %v628
    %v635 = vsel %vm539, %v588, %v515
    %v636 = vsel %vm540, %v602, %v516
    %v637 = vsel %vm541, %v616, %v517
    %v638 = vsel %vm542, %v630, %v518
    %639 = vst [vmem:[#allocation6] sm:$0xff] %v635
    %640 = vst [vmem:[#allocation6 + $0x8] sm:$0xff] %v636
    %641 = vst [vmem:[#allocation6 + $0x10] sm:$0xff] %v637
    %642 = vst [vmem:[#allocation6 + $0x18] sm:$0xff] %v638
    %643 = vset.pattern.permute.xlu0 1
    %644 = vperm.xlu0 %643, %v280
    %v645 = vpop.permute.xlu0 %644
    %646 = vset.pattern.permute.xlu0 1
    %647 = vperm.xlu0 %646, %v281
    %v648 = vpop.permute.xlu0 %647
    %649 = vset.pattern.permute.xlu0 1
    %650 = vperm.xlu0 %649, %v282
    %v651 = vpop.permute.xlu0 %650
    %652 = vset.pattern.permute.xlu0 1
    %653 = vperm.xlu0 %652, %v283
    %v654 = vpop.permute.xlu0 %653
    %vm655 = vcmp.eq.s32.totalorder %v645, 1
    %vm656 = vcmp.eq.s32.totalorder %v648, 1
    %vm657 = vcmp.eq.s32.totalorder %v651, 1
    %vm658 = vcmp.eq.s32.totalorder %v654, 1
    %v659 = vsel %vm655, %v348, %v301
    %v660 = vsel %vm656, %v362, %v301
    %v661 = vsel %vm657, %v376, %v301
    %v662 = vsel %vm658, %v390, %v301
    %663 = vset.pattern.permute.xlu0 1
    %664 = vperm.xlu0 %663, %v403
    %v665 = vpop.permute.xlu0 %664
    %666 = vset.pattern.permute.xlu0 1
    %667 = vperm.xlu0 %666, %v404
    %v668 = vpop.permute.xlu0 %667
    %669 = vset.pattern.permute.xlu0 1
    %670 = vperm.xlu0 %669, %v405
    %v671 = vpop.permute.xlu0 %670
    %672 = vset.pattern.permute.xlu0 1
    %673 = vperm.xlu0 %672, %v406
    %v674 = vpop.permute.xlu0 %673
    %vm675 = vcmp.eq.s32.totalorder %v665, 1
    %vm676 = vcmp.eq.s32.totalorder %v668, 1
    %vm677 = vcmp.eq.s32.totalorder %v671, 1
    %vm678 = vcmp.eq.s32.totalorder %v674, 1
    %v679 = vsel %vm675, %v468, %v659
    %v680 = vsel %vm676, %v482, %v660
    %v681 = vsel %vm677, %v496, %v661
    %v682 = vsel %vm678, %v510, %v662
    %683 = vset.pattern.permute.xlu0 1
    %684 = vperm.xlu0 %683, %v523
    %v685 = vpop.permute.xlu0 %684
    %686 = vset.pattern.permute.xlu0 1
    %687 = vperm.xlu0 %686, %v524
    %v688 = vpop.permute.xlu0 %687
    %689 = vset.pattern.permute.xlu0 1
    %690 = vperm.xlu0 %689, %v525
    %v691 = vpop.permute.xlu0 %690
    %692 = vset.pattern.permute.xlu0 1
    %693 = vperm.xlu0 %692, %v526
    %v694 = vpop.permute.xlu0 %693
    %vm695 = vcmp.eq.s32.totalorder %v685, 1
    %vm696 = vcmp.eq.s32.totalorder %v688, 1
    %vm697 = vcmp.eq.s32.totalorder %v691, 1
    %vm698 = vcmp.eq.s32.totalorder %v694, 1
    %v699 = vsel %vm695, %v588, %v679
    %v700 = vsel %vm696, %v602, %v680
    %v701 = vsel %vm697, %v616, %v681
    %v702 = vsel %vm698, %v630, %v682
    %703 = vst [vmem:[#allocation8] sm:$0xff] %v699
    %704 = vst [vmem:[#allocation8 + $0x8] sm:$0xff] %v700
    %705 = vst [vmem:[#allocation8 + $0x10] sm:$0xff] %v701
    %706 = vst [vmem:[#allocation8 + $0x18] sm:$0xff] %v702
    %707 = vset.pattern.permute.xlu0 2
    %708 = vperm.xlu0 %707, %v280
    %v709 = vpop.permute.xlu0 %708
    %710 = vset.pattern.permute.xlu0 2
    %711 = vperm.xlu0 %710, %v281
    %v712 = vpop.permute.xlu0 %711
    %713 = vset.pattern.permute.xlu0 2
    %714 = vperm.xlu0 %713, %v282
    %v715 = vpop.permute.xlu0 %714
    %716 = vset.pattern.permute.xlu0 2
    %717 = vperm.xlu0 %716, %v283
    %v718 = vpop.permute.xlu0 %717
    %vm719 = vcmp.eq.s32.totalorder %v709, 1
    %vm720 = vcmp.eq.s32.totalorder %v712, 1
    %vm721 = vcmp.eq.s32.totalorder %v715, 1
    %vm722 = vcmp.eq.s32.totalorder %v718, 1
    %v723 = vsel %vm719, %v348, %v301
    %v724 = vsel %vm720, %v362, %v301
    %v725 = vsel %vm721, %v376, %v301
    %v726 = vsel %vm722, %v390, %v301
    %727 = vset.pattern.permute.xlu0 2
    %728 = vperm.xlu0 %727, %v403
    %v729 = vpop.permute.xlu0 %728
    %730 = vset.pattern.permute.xlu0 2
    %731 = vperm.xlu0 %730, %v404
    %v732 = vpop.permute.xlu0 %731
    %733 = vset.pattern.permute.xlu0 2
    %734 = vperm.xlu0 %733, %v405
    %v735 = vpop.permute.xlu0 %734
    %736 = vset.pattern.permute.xlu0 2
    %737 = vperm.xlu0 %736, %v406
    %v738 = vpop.permute.xlu0 %737
    %vm739 = vcmp.eq.s32.totalorder %v729, 1
    %vm740 = vcmp.eq.s32.totalorder %v732, 1
    %vm741 = vcmp.eq.s32.totalorder %v735, 1
    %vm742 = vcmp.eq.s32.totalorder %v738, 1
    %v743 = vsel %vm739, %v468, %v723
    %v744 = vsel %vm740, %v482, %v724
    %v745 = vsel %vm741, %v496, %v725
    %v746 = vsel %vm742, %v510, %v726
    %747 = vset.pattern.permute.xlu0 2
    %748 = vperm.xlu0 %747, %v523
    %v749 = vpop.permute.xlu0 %748
    %750 = vset.pattern.permute.xlu0 2
    %751 = vperm.xlu0 %750, %v524
    %v752 = vpop.permute.xlu0 %751
    %753 = vset.pattern.permute.xlu0 2
    %754 = vperm.xlu0 %753, %v525
    %v755 = vpop.permute.xlu0 %754
    %756 = vset.pattern.permute.xlu0 2
    %757 = vperm.xlu0 %756, %v526
    %v758 = vpop.permute.xlu0 %757
    %vm759 = vcmp.eq.s32.totalorder %v749, 1
    %vm760 = vcmp.eq.s32.totalorder %v752, 1
    %vm761 = vcmp.eq.s32.totalorder %v755, 1
    %vm762 = vcmp.eq.s32.totalorder %v758, 1
    %v763 = vsel %vm759, %v588, %v743
    %v764 = vsel %vm760, %v602, %v744
    %v765 = vsel %vm761, %v616, %v745
    %v766 = vsel %vm762, %v630, %v746
    %767 = vst [vmem:[#allocation9] sm:$0xff] %v763
    %768 = vst [vmem:[#allocation9 + $0x8] sm:$0xff] %v764
    %769 = vst [vmem:[#allocation9 + $0x10] sm:$0xff] %v765
    %770 = vst [vmem:[#allocation9 + $0x18] sm:$0xff] %v766
    %771 = vset.pattern.permute.xlu0 3
    %772 = vperm.xlu0 %771, %v280
    %v773 = vpop.permute.xlu0 %772
    %774 = vset.pattern.permute.xlu0 3
    %775 = vperm.xlu0 %774, %v281
    %v776 = vpop.permute.xlu0 %775
    %777 = vset.pattern.permute.xlu0 3
    %778 = vperm.xlu0 %777, %v282
    %v779 = vpop.permute.xlu0 %778
    %780 = vset.pattern.permute.xlu0 3
    %781 = vperm.xlu0 %780, %v283
    %v782 = vpop.permute.xlu0 %781
    %vm783 = vcmp.eq.s32.totalorder %v773, 1
    %vm784 = vcmp.eq.s32.totalorder %v776, 1
    %vm785 = vcmp.eq.s32.totalorder %v779, 1
    %vm786 = vcmp.eq.s32.totalorder %v782, 1
    %v787 = vsel %vm783, %v348, %v301
    %v788 = vsel %vm784, %v362, %v301
    %v789 = vsel %vm785, %v376, %v301
    %v790 = vsel %vm786, %v390, %v301
    %791 = vset.pattern.permute.xlu0 3
    %792 = vperm.xlu0 %791, %v403
    %v793 = vpop.permute.xlu0 %792
    %794 = vset.pattern.permute.xlu0 3
    %795 = vperm.xlu0 %794, %v404
    %v796 = vpop.permute.xlu0 %795
    %797 = vset.pattern.permute.xlu0 3
    %798 = vperm.xlu0 %797, %v405
    %v799 = vpop.permute.xlu0 %798
    %800 = vset.pattern.permute.xlu0 3
    %801 = vperm.xlu0 %800, %v406
    %v802 = vpop.permute.xlu0 %801
    %vm803 = vcmp.eq.s32.totalorder %v793, 1
    %vm804 = vcmp.eq.s32.totalorder %v796, 1
    %vm805 = vcmp.eq.s32.totalorder %v799, 1
    %vm806 = vcmp.eq.s32.totalorder %v802, 1
    %v807 = vsel %vm803, %v468, %v787
    %v808 = vsel %vm804, %v482, %v788
    %v809 = vsel %vm805, %v496, %v789
    %v810 = vsel %vm806, %v510, %v790
    %811 = vset.pattern.permute.xlu0 3
    %812 = vperm.xlu0 %811, %v523
    %v813 = vpop.permute.xlu0 %812
    %814 = vset.pattern.permute.xlu0 3
    %815 = vperm.xlu0 %814, %v524
    %v816 = vpop.permute.xlu0 %815
    %817 = vset.pattern.permute.xlu0 3
    %818 = vperm.xlu0 %817, %v525
    %v819 = vpop.permute.xlu0 %818
    %820 = vset.pattern.permute.xlu0 3
    %821 = vperm.xlu0 %820, %v526
    %v822 = vpop.permute.xlu0 %821
    %vm823 = vcmp.eq.s32.totalorder %v813, 1
    %vm824 = vcmp.eq.s32.totalorder %v816, 1
    %vm825 = vcmp.eq.s32.totalorder %v819, 1
    %vm826 = vcmp.eq.s32.totalorder %v822, 1
    %v827 = vsel %vm823, %v588, %v807
    %v828 = vsel %vm824, %v602, %v808
    %v829 = vsel %vm825, %v616, %v809
    %v830 = vsel %vm826, %v630, %v810
    %831 = vst [vmem:[#allocation11] sm:$0xff] %v827
    %832 = vst [vmem:[#allocation11 + $0x8] sm:$0xff] %v828
    %833 = vst [vmem:[#allocation11 + $0x10] sm:$0xff] %v829
    %834 = vst [vmem:[#allocation11 + $0x18] sm:$0xff] %v830
    %835 = vset.pattern.permute.xlu0 4
    %836 = vperm.xlu0 %835, %v280
    %v837 = vpop.permute.xlu0 %836
    %838 = vset.pattern.permute.xlu0 4
    %839 = vperm.xlu0 %838, %v281
    %v840 = vpop.permute.xlu0 %839
    %841 = vset.pattern.permute.xlu0 4
    %842 = vperm.xlu0 %841, %v282
    %v843 = vpop.permute.xlu0 %842
    %844 = vset.pattern.permute.xlu0 4
    %845 = vperm.xlu0 %844, %v283
    %v846 = vpop.permute.xlu0 %845
    %vm847 = vcmp.eq.s32.totalorder %v837, 1
    %vm848 = vcmp.eq.s32.totalorder %v840, 1
    %vm849 = vcmp.eq.s32.totalorder %v843, 1
    %vm850 = vcmp.eq.s32.totalorder %v846, 1
    %v851 = vsel %vm847, %v348, %v301
    %v852 = vsel %vm848, %v362, %v301
    %v853 = vsel %vm849, %v376, %v301
    %v854 = vsel %vm850, %v390, %v301
    %855 = vset.pattern.permute.xlu0 4
    %856 = vperm.xlu0 %855, %v403
    %v857 = vpop.permute.xlu0 %856
    %858 = vset.pattern.permute.xlu0 4
    %859 = vperm.xlu0 %858, %v404
    %v860 = vpop.permute.xlu0 %859
    %861 = vset.pattern.permute.xlu0 4
    %862 = vperm.xlu0 %861, %v405
    %v863 = vpop.permute.xlu0 %862
    %864 = vset.pattern.permute.xlu0 4
    %865 = vperm.xlu0 %864, %v406
    %v866 = vpop.permute.xlu0 %865
    %vm867 = vcmp.eq.s32.totalorder %v857, 1
    %vm868 = vcmp.eq.s32.totalorder %v860, 1
    %vm869 = vcmp.eq.s32.totalorder %v863, 1
    %vm870 = vcmp.eq.s32.totalorder %v866, 1
    %v871 = vsel %vm867, %v468, %v851
    %v872 = vsel %vm868, %v482, %v852
    %v873 = vsel %vm869, %v496, %v853
    %v874 = vsel %vm870, %v510, %v854
    %875 = vset.pattern.permute.xlu0 4
    %876 = vperm.xlu0 %875, %v523
    %v877 = vpop.permute.xlu0 %876
    %878 = vset.pattern.permute.xlu0 4
    %879 = vperm.xlu0 %878, %v524
    %v880 = vpop.permute.xlu0 %879
    %881 = vset.pattern.permute.xlu0 4
    %882 = vperm.xlu0 %881, %v525
    %v883 = vpop.permute.xlu0 %882
    %884 = vset.pattern.permute.xlu0 4
    %885 = vperm.xlu0 %884, %v526
    %v886 = vpop.permute.xlu0 %885
    %vm887 = vcmp.eq.s32.totalorder %v877, 1
    %vm888 = vcmp.eq.s32.totalorder %v880, 1
    %vm889 = vcmp.eq.s32.totalorder %v883, 1
    %vm890 = vcmp.eq.s32.totalorder %v886, 1
    %v891 = vsel %vm887, %v588, %v871
    %v892 = vsel %vm888, %v602, %v872
    %v893 = vsel %vm889, %v616, %v873
    %v894 = vsel %vm890, %v630, %v874
    %895 = vst [vmem:[#allocation12] sm:$0xff] %v891
    %896 = vst [vmem:[#allocation12 + $0x8] sm:$0xff] %v892
    %897 = vst [vmem:[#allocation12 + $0x10] sm:$0xff] %v893
    %898 = vst [vmem:[#allocation12 + $0x18] sm:$0xff] %v894
    // Predicated region
    $region18: #{tpu_custom_call.1} parent=1 // pred_check
      _
    $region19: #{tpu_custom_call.1} parent=1 // pred_check_branch
      %900 = sbr.rel (0) target = $region21
    $region20: #{tpu_custom_call.1} parent=1 // pred_region
      %902 = vsyncadd [#allocation4], 0
      %s903 = sshll.u32 [#allocation5], 4
      %s904 = int_to_ptr.vmem [resolvable:$true] %s903
      %s905 = sshll.u32 %s3, 4
      %s906 = int_to_ptr.hbm [resolvable:$true] %s905
      %911 = dma.vmem_to_hbm [thread:$0]  %s904, 512, %s906, [#allocation4], 128, 128, 8
    $region21: #{tpu_custom_call.1} parent=1 // pred_fallthru
      _
    // Predicated region
    $region22: #{tpu_custom_call.1} parent=1 // pred_check
      _
    $region23: #{tpu_custom_call.1} parent=1 // pred_check_branch
      %913 = sbr.rel (0) target = $region25
    $region24: #{tpu_custom_call.1} parent=1 // pred_region
      %915 = vsyncadd [#allocation7], 0
      %s916 = sshll.u32 [#allocation6], 4
      %s917 = int_to_ptr.vmem [resolvable:$true] %s916
      %s918 = sshll.u32 %s4, 4
      %s919 = int_to_ptr.hbm [resolvable:$true] %s918
      %924 = dma.vmem_to_hbm [thread:$0]  %s917, 512, %s919, [#allocation7], 128, 128, 8
    $region25: #{tpu_custom_call.1} parent=1 // pred_fallthru
      _
    // Predicated region
    $region26: #{tpu_custom_call.1} parent=1 // pred_check
      _
    $region27: #{tpu_custom_call.1} parent=1 // pred_check_branch
      %926 = sbr.rel (0) target = $region29
    $region28: #{tpu_custom_call.1} parent=1 // pred_region
      %928 = vsyncadd [#allocation7], 0
      %s929 = sshll.u32 [#allocation8], 4
      %s930 = int_to_ptr.vmem [resolvable:$true] %s929
      %s931 = sshll.u32 %s5, 4
      %s932 = int_to_ptr.hbm [resolvable:$true] %s931
      %937 = dma.vmem_to_hbm [thread:$0]  %s930, 512, %s932, [#allocation7], 128, 128, 8
    $region29: #{tpu_custom_call.1} parent=1 // pred_fallthru
      _
    // Predicated region
    $region30: #{tpu_custom_call.1} parent=1 // pred_check
      _
    $region31: #{tpu_custom_call.1} parent=1 // pred_check_branch
      %939 = sbr.rel (0) target = $region33
    $region32: #{tpu_custom_call.1} parent=1 // pred_region
      %941 = vsyncadd [#allocation10], 0
      %s942 = sshll.u32 [#allocation9], 4
      %s943 = int_to_ptr.vmem [resolvable:$true] %s942
      %s944 = sshll.u32 %s6, 4
      %s945 = int_to_ptr.hbm [resolvable:$true] %s944
      %950 = dma.vmem_to_hbm [thread:$0]  %s943, 512, %s945, [#allocation10], 128, 128, 8
    $region33: #{tpu_custom_call.1} parent=1 // pred_fallthru
      _
    // Predicated region
    $region34: #{tpu_custom_call.1} parent=1 // pred_check
      _
    $region35: #{tpu_custom_call.1} parent=1 // pred_check_branch
      %952 = sbr.rel (0) target = $region37
    $region36: #{tpu_custom_call.1} parent=1 // pred_region
      %954 = vsyncadd [#allocation10], 0
      %s955 = sshll.u32 [#allocation11], 4
      %s956 = int_to_ptr.vmem [resolvable:$true] %s955
      %s957 = sshll.u32 %s7, 4
      %s958 = int_to_ptr.hbm [resolvable:$true] %s957
      %963 = dma.vmem_to_hbm [thread:$0]  %s956, 512, %s958, [#allocation10], 128, 128, 8
    $region37: #{tpu_custom_call.1} parent=1 // pred_fallthru
      _
    // Predicated region
    $region38: #{tpu_custom_call.1} parent=1 // pred_check
      _
    $region39: #{tpu_custom_call.1} parent=1 // pred_check_branch
      %965 = sbr.rel (0) target = $region41
    $region40: #{tpu_custom_call.1} parent=1 // pred_region
      %967 = vsyncadd [#allocation13], 0
      %s968 = sshll.u32 [#allocation12], 4
      %s969 = int_to_ptr.vmem [resolvable:$true] %s968
      %s970 = sshll.u32 %s8, 4
      %s971 = int_to_ptr.hbm [resolvable:$true] %s970
      %976 = dma.vmem_to_hbm [thread:$0]  %s969, 512, %s971, [#allocation13], 128, 128, 8
    $region41: #{tpu_custom_call.1} parent=1 // pred_fallthru
      _
    // Predicated region
    $region42: #{tpu_custom_call.1} parent=1 // pred_check
      _
    $region43: #{tpu_custom_call.1} parent=1 // pred_check_branch
      %978 = sbr.rel (0) target = $region45
    $region44: #{tpu_custom_call.1} parent=1 // pred_region
      %980 = dma.done [#allocation4], 512
    $region45: #{tpu_custom_call.1} parent=1 // pred_fallthru
      _
    // Predicated region
    $region46: #{tpu_custom_call.1} parent=1 // pred_check
      _
    $region47: #{tpu_custom_call.1} parent=1 // pred_check_branch
      %982 = sbr.rel (0) target = $region49
    $region48: #{tpu_custom_call.1} parent=1 // pred_region
      %984 = dma.done [#allocation7], 512
    $region49: #{tpu_custom_call.1} parent=1 // pred_fallthru
      _
    // Predicated region
    $region50: #{tpu_custom_call.1} parent=1 // pred_check
      _
    $region51: #{tpu_custom_call.1} parent=1 // pred_check_branch
      %986 = sbr.rel (0) target = $region53
    $region52: #{tpu_custom_call.1} parent=1 // pred_region
      %988 = dma.done [#allocation7], 512
    $region53: #{tpu_custom_call.1} parent=1 // pred_fallthru
      _
    // Predicated region
    $region54: #{tpu_custom_call.1} parent=1 // pred_check
      _
    $region55: #{tpu_custom_call.1} parent=1 // pred_check_branch
      %990 = sbr.rel (0) target = $region57
    $region56: #{tpu_custom_call.1} parent=1 // pred_region
      %992 = dma.done [#allocation10], 512
    $region57: #{tpu_custom_call.1} parent=1 // pred_fallthru
      _
    // Predicated region
    $region58: #{tpu_custom_call.1} parent=1 // pred_check
      _
    $region59: #{tpu_custom_call.1} parent=1 // pred_check_branch
      %994 = sbr.rel (0) target = $region61
    $region60: #{tpu_custom_call.1} parent=1 // pred_region
      %996 = dma.done [#allocation10], 512
    $region61: #{tpu_custom_call.1} parent=1 // pred_fallthru
      _
    // Predicated region
    $region62: #{tpu_custom_call.1} parent=1 // pred_check
      _
    $region63: #{tpu_custom_call.1} parent=1 // pred_check_branch
      %998 = sbr.rel (0) target = $region65
    $region64: #{tpu_custom_call.1} parent=1 // pred_region
      %1000 = dma.done [#allocation13], 512
    $region65: #{tpu_custom_call.1} parent=1 // pred_fallthru
      _
    %1001 = vsyncpa [#allocation3], 1
    %1002 = vsyncpa [#allocation4], 1
    %1003 = vsyncpa [#allocation7], 1
    %1004 = vsyncpa [#allocation10], 1
    %1005 = vsyncpa [#allocation13], 1

</llo_original>
